<compile_context>
chip_gen: v7x
topology: tpu7x:2x2x1
jax: 0.10.0
libtpu: 0.0.40
codegen_flags: <defaults>
</compile_context>

<pallas_src>
import jax
import jax.numpy as jnp
from jax.experimental import pallas as pl
from jax.experimental.pallas import tpu as pltpu

_LANES = 128
_BLOCK_BYTES = 8 * 1024 * 1024      # per-block slab for the streaming variant
_VMEM_LIMIT_BYTES = 40 << 20        # 2 double-buffered in + 2 out slabs (32 MiB) + headroom;
                                    # above v5e's 16 MiB default, below v7x's 64 MiB physical


# --------------------------------------------------------------------------
# Forward: identity (matches AlwaysNo.forward).  No kernel, no HBM traffic.
# --------------------------------------------------------------------------
def always_no_forward(x):
    """AlwaysNo.forward(inputs) -> inputs."""
    return x


# --------------------------------------------------------------------------
# Materialized copy, preferred: one HBM->HBM DMA (TensorCore stays idle).
# --------------------------------------------------------------------------
def _dma_copy_kernel(x_hbm, o_hbm, sem):
    cp = pltpu.make_async_copy(x_hbm, o_hbm, sem)
    cp.start()
    cp.wait()


def always_no_copy(x):
    """Identity copy into a fresh buffer via a single HBM->HBM DMA."""
    return pl.pallas_call(
        _dma_copy_kernel,
        out_shape=jax.ShapeDtypeStruct(x.shape, x.dtype),
        in_specs=[pl.BlockSpec(memory_space=pl.ANY)],
        out_specs=pl.BlockSpec(memory_space=pl.ANY),
        scratch_shapes=[pltpu.SemaphoreType.DMA],
    )(x)


# --------------------------------------------------------------------------
# Materialized copy, alternative: lane-dense streaming through VMEM.
# --------------------------------------------------------------------------
def _stream_copy_kernel(x_ref, o_ref):
    o_ref[...] = x_ref[...]


def always_no_copy_streaming(x):
    """Identity copy streamed through VMEM in lane-dense (rows, 128) blocks."""
    total = x.size
    itemsize = jnp.dtype(x.dtype).itemsize
    if total == 0:
        return x
    if total % _LANES != 0 or itemsize > 4:
        # Awkward sizes / wide dtypes: pure-DMA copy (no VMEM hazard, no masked vst).
        return always_no_copy(x)

    rows = total // _LANES
    flat = x.reshape(rows, _LANES)

    # dtype-aware packed-sublane multiple: 8 (f32/i32) / 16 (bf16) / 32 (int8/fp8)
    sub = max(8, 32 // itemsize)

    max_block_rows = max(sub, (_BLOCK_BYTES // (_LANES * itemsize)) // sub * sub)
    block_rows = min(rows, max_block_rows)
    if block_rows < rows:
        # Round down to a full packed-vreg multiple; cdiv grid handles the tail.
        block_rows = max(sub, block_rows - block_rows % sub)
    elif rows >= 2 * sub:
        # Would be a single-step grid: split in two so both v7x cores get work.
        half = -(-rows // 2)
        block_rows = -(-half // sub) * sub

    grid = (pl.cdiv(rows, block_rows),)
    out = pl.pallas_call(
        _stream_copy_kernel,
        out_shape=jax.ShapeDtypeStruct((rows, _LANES), x.dtype),
        grid_spec=pl.GridSpec(
            grid=grid,
            in_specs=[pl.BlockSpec((block_rows, _LANES), lambda i: (i, 0))],
            out_specs=pl.BlockSpec((block_rows, _LANES), lambda i: (i, 0)),
        ),
        compiler_params=pltpu.CompilerParams(
            dimension_semantics=("parallel",),
            vmem_limit_bytes=_VMEM_LIMIT_BYTES,
        ),
    )(flat)
    return out.reshape(x.shape)


def preprocess_inputs(inputs):
    # Mirrors AlwaysNo.preprocess_inputs: list of zeros, one per input.
    return [0.0] * len(inputs)


if __name__ == "__main__":
    key = jax.random.PRNGKey(0)
    x = jax.random.normal(key, (2, 4, 16, 16), dtype=jnp.float32)

    # Primary path: true identity (matches PyTorch forward), zero HBM traffic.
    y = jax.block_until_ready(always_no_forward(x))
    assert y.shape == x.shape and y.dtype == x.dtype
    assert bool(jnp.all(y == x))

    # Materialized copy: single HBM->HBM DMA.
    z = jax.block_until_ready(always_no_copy(x))
    assert z.shape == x.shape and z.dtype == x.dtype
    assert bool(jnp.all(z == x))

    # Streaming VMEM copy (lane-dense, 2-step grid for the f32 example).
    w = jax.block_until_ready(always_no_copy_streaming(x))
    assert w.shape == x.shape and w.dtype == x.dtype
    assert bool(jnp.all(w == x))

    # bf16 exercises the dtype-aware packed-sublane path (sub = 16).
    xb = jax.random.normal(key, (8, 16, 16), dtype=jnp.bfloat16)
    zb = jax.block_until_ready(always_no_copy_streaming(xb))
    assert zb.shape == xb.shape and zb.dtype == xb.dtype
    assert bool(jnp.all(zb == xb))

    # Awkward size (not a multiple of 128 elements) routes to the DMA copy.
    xa = jax.random.normal(key, (3, 5, 7), dtype=jnp.float32)
    za = jax.block_until_ready(always_no_copy_streaming(xa))
    assert za.shape == xa.shape and za.dtype == xa.dtype
    assert bool(jnp.all(za == xa))

    # Pure-Python preprocess path.
    pre = preprocess_inputs([x[i] for i in range(x.shape[0])])
    assert pre == [0.0, 0.0]

    print("KERNEL_OK")
</pallas_src>

<mosaic_0001>
module attributes {stable_mosaic.version = 11 : i64} {
  func.func @_dma_copy_kernel(%arg0: memref<2x4x16x16xf32, #tpu.memory_space<any>>, %arg1: memref<2x4x16x16xf32, #tpu.memory_space<any>>, %arg2: memref<!tpu.dma_semaphore, #tpu.memory_space<semaphore_mem>>) attributes {dimension_semantics = [], scalar_prefetch = 0 : i64, scratch_operands = 1 : i64, tpu.core_type = #tpu.core_type<tc>} {
    tpu.enqueue_dma source(%arg0 : memref<2x4x16x16xf32, #tpu.memory_space<any>>) target(%arg1 : memref<2x4x16x16xf32, #tpu.memory_space<any>>) target_semaphore(%arg2 : memref<!tpu.dma_semaphore, #tpu.memory_space<semaphore_mem>>)
    tpu.wait_dma2 semaphore(%arg2 : memref<!tpu.dma_semaphore, #tpu.memory_space<semaphore_mem>>) src(%arg0 : memref<2x4x16x16xf32, #tpu.memory_space<any>>) dst(%arg1 : memref<2x4x16x16xf32, #tpu.memory_space<any>>)
    return
  }
}

</mosaic_0001>

<llo_original>
// kernel: tpu_custom_call.1
$region0: #{tpu_custom_call.1}
  #allocation0 [shape = 'u32[]', space=smem, size = 0x4, offset = 0x4, fixed_abs, tag = 'smem constant byte address 0x4 - core index']
  #allocation1 [shape = 'u32[144,128]{1,0:T(1,128)}', space=vmem, size = 0x12000, scoped, tag = 'internal scratch']
  #allocation2 [shape = 's32[1]{0}', space=sflag, size = 0x4, scoped, tag = 'scratch operand']
  #allocation3 [shape = 's32[]', space=sflag, size = 0x4, offset = 0, fixed_abs, tag = 'sflag constant byte address 0x0 - dummy sync flag']
  #allocation4 [shape = 'u32[0]{0}', space=smem, size = 0, offset = 0, fixed_abs, tag = 'smem constant byte address 0x0 - null']
  %s0 = inlined_call_operand.hbm [shape: f32[2,4,16,16], index: 0, kind: input, shape index: {}]
  %s1 = inlined_call_operand.hbm [shape: f32[2,4,16,16], index: 1, kind: output, shape index: {}]
  %s2 = sld [smem:[#allocation0]]
  $region2: #{tpu_custom_call.1} parent=0
    _
  %s4 = ssub.s32 1, %s2
  %s5 = scalar_select 0, %s4, %s2
  %s7 = sshll.u32 1, 14
  %s8 = sxor.u32 4294967295, %s7
  %s11 = sshll.u32 3, 24
  %s12 = sxor.u32 4294967295, %s11
  %s13 = sand.u32 0, %s12
  %s15 = sor.u32 %s13, 0
  %18 = dma.general %s0, 2048, %s1, [#allocation2], [#allocation3], [#allocation4], %s15, 0
  %s19 = smul.u32 2, 4
  %s20 = smul.u32 %s19, 16
  %s21 = smul.u32 %s20, 1
  %s22 = sshll.u32 %s21, 4
  %23 = dma.done [#allocation2], %s22
  %24 = vsyncmov [#allocation2]
  %s25 = vpop.sfrf %24
  %p26 = scmp.eq.s32.totalorder %s25, 0
  %p27 = pneg %p26
  %29 = shalt.err (%p27)

</llo_original>
